<compile_context>
chip_gen: v5e
topology: v5e:2x2
jax: 0.10.0
libtpu: 0.0.40
codegen_flags: <defaults>
</compile_context>

<pallas_src>
import jax
import jax.numpy as jnp
from jax.experimental import pallas as pl
from jax.experimental.pallas import tpu as pltpu

_LANE = 128
_SUBLANE = 8
_ROW_BLOCK_MAX = 2048        # 2048 rows x 128 lanes = 256K f32 elems (1 MiB) per ref per step
_TARGET_GRID = 8             # aim for >= this many grid steps on large inputs (megacore + pipelining)
_SMALL_2D_LIMIT = 256 * 1024 # non-lane-aligned sizes up to this run as a single (1, T) block


def _rbf_kernel(params_ref, c_ref, t_ref, wc_ref, wt_ref, oc_ref, ot_ref):
    # params_ref (SMEM, shape (4,)): [cause_clt, cause_std, target_clt, target_std]
    c_clt = params_ref[0]
    c_std = params_ref[1]
    t_clt = params_ref[2]
    t_std = params_ref[3]

    # Fold -0.5 into the scalar scale (stays on the scalar ALU; reproduces the torch
    # precedence exp(-0.5*(x-c)^2 * s^2), NOT the mathematical Gaussian).
    k_c = -0.5 * (c_std * c_std)
    k_t = -0.5 * (t_std * t_std)

    dc = c_ref[...] - c_clt
    dt = t_ref[...] - t_clt
    oc_ref[...] = wc_ref[...] * jnp.exp(dc * dc * k_c)
    ot_ref[...] = wt_ref[...] * jnp.exp(dt * dt * k_t)


def _pick_row_block(rows):
    """Sublane-dense row block: multiple of 8 (or the full extent), capped at 2048."""
    if rows <= _SUBLANE:
        return rows
    rb = pl.cdiv(rows, _TARGET_GRID)
    rb = max(_SUBLANE, min(_ROW_BLOCK_MAX, rb))
    rb = ((rb + _SUBLANE - 1) // _SUBLANE) * _SUBLANE
    if rb >= rows:
        return rows
    return rb


def _rbf_call(params, xs, rows, cols, row_block):
    """xs: 4 arrays of shape (rows, cols); returns 2 arrays of shape (rows, cols)."""
    grid = (pl.cdiv(rows, row_block),)
    spec = pl.BlockSpec((row_block, cols), lambda i, p: (i, 0))
    n = rows * cols
    return pl.pallas_call(
        _rbf_kernel,
        out_shape=(jax.ShapeDtypeStruct((rows, cols), jnp.float32),
                   jax.ShapeDtypeStruct((rows, cols), jnp.float32)),
        grid_spec=pltpu.PrefetchScalarGridSpec(
            num_scalar_prefetch=1,
            grid=grid,
            in_specs=[spec, spec, spec, spec],
            out_specs=[spec, spec],
        ),
        compiler_params=pltpu.CompilerParams(
            dimension_semantics=("parallel",),  # shards row blocks across TCs on v7x
        ),
        cost_estimate=pl.CostEstimate(
            flops=8 * n,
            transcendentals=2 * n,
            bytes_accessed=6 * 4 * n,
        ),
    )(params, *xs)


def rbf_layer_forward(cause, target, w_cause, w_target,
                      cause_clt, cause_std, target_clt, target_std):
    """cause/target/w_cause/w_target: (timelag,) arrays; clt/std: scalars (or shape-(1,))."""
    t = cause.shape[0]
    f32 = jnp.float32

    params = jnp.stack([
        jnp.reshape(jnp.asarray(cause_clt, f32), ()),
        jnp.reshape(jnp.asarray(cause_std, f32), ()),
        jnp.reshape(jnp.asarray(target_clt, f32), ()),
        jnp.reshape(jnp.asarray(target_std, f32), ()),
    ])
    xs = [jnp.asarray(v, f32) for v in (cause, target, w_cause, w_target)]

    if t % _LANE == 0:
        # Lane-aligned: free metadata reshape to a lane/sublane-dense (rows, 128) layout,
        # no padding, no post-slice.
        rows = t // _LANE
        xs2 = [x.reshape(rows, _LANE) for x in xs]
        rb = _pick_row_block(rows)
        oc, ot = _rbf_call(params, xs2, rows, _LANE, rb)
        return oc.reshape(t), ot.reshape(t)

    if t <= _SMALL_2D_LIMIT:
        # Small / ragged: one (1, T) full block per array; no padding, no post-slice.
        xs2 = [x.reshape(1, t) for x in xs]
        oc, ot = _rbf_call(params, xs2, 1, t, 1)
        return oc.reshape(t), ot.reshape(t)

    # Large and not lane-aligned: the only case where a host-side pad/slice is needed.
    t_pad = pl.cdiv(t, _LANE) * _LANE
    rows = t_pad // _LANE
    xs2 = [jnp.pad(x, (0, t_pad - t)).reshape(rows, _LANE) for x in xs]
    rb = _pick_row_block(rows)
    oc, ot = _rbf_call(params, xs2, rows, _LANE, rb)
    return oc.reshape(t_pad)[:t], ot.reshape(t_pad)[:t]


def _reference(cause, target, w_cause, w_target,
               cause_clt, cause_std, target_clt, target_std):
    def rbf(x, c, s):
        return jnp.exp(-(x - c) * (x - c) / 2 * (s * s))
    return (w_cause * rbf(cause, cause_clt, cause_std),
            w_target * rbf(target, target_clt, target_std))


if __name__ == "__main__":
    key = jax.random.PRNGKey(0)
    keys = jax.random.split(key, 8)

    ok = True
    # 8 and 200: ragged (1, T) path; 2560: lane-dense (rows, 128) path with an uneven row grid.
    for timelag in (8, 200, 2560):
        # Deterministic parameter init (uniform [0,1), mirroring the torch shapes).
        w_cause = jax.random.uniform(keys[0], (timelag,), dtype=jnp.float32)
        w_target = jax.random.uniform(keys[1], (timelag,), dtype=jnp.float32)
        cause_clt = jax.random.uniform(keys[2], (1,), dtype=jnp.float32)
        cause_std = jax.random.uniform(keys[3], (1,), dtype=jnp.float32)
        target_clt = jax.random.uniform(keys[4], (1,), dtype=jnp.float32)
        target_std = jax.random.uniform(keys[5], (1,), dtype=jnp.float32)

        # Example inputs: 1-D series of length `timelag`.
        cause = jax.random.normal(keys[6], (timelag,), dtype=jnp.float32)
        target = jax.random.normal(keys[7], (timelag,), dtype=jnp.float32)

        cause_out, target_out = rbf_layer_forward(
            cause, target, w_cause, w_target,
            cause_clt, cause_std, target_clt, target_std)
        jax.block_until_ready((cause_out, target_out))

        ref_c, ref_t = _reference(cause, target, w_cause, w_target,
                                  cause_clt, cause_std, target_clt, target_std)
        ok &= bool(jnp.allclose(cause_out, ref_c, atol=1e-6, rtol=1e-5))
        ok &= bool(jnp.allclose(target_out, ref_t, atol=1e-6, rtol=1e-5))

    assert ok
    print("KERNEL_OK")
</pallas_src>

<mosaic_0001>
module attributes {stable_mosaic.version = 11 : i64} {
  func.func @_rbf_kernel(%arg0: i32, %arg1: memref<4xf32, #tpu.memory_space<smem>>, %arg2: memref<1x8xf32, #tpu.memory_space<vmem>>, %arg3: memref<1x8xf32, #tpu.memory_space<vmem>>, %arg4: memref<1x8xf32, #tpu.memory_space<vmem>>, %arg5: memref<1x8xf32, #tpu.memory_space<vmem>>, %arg6: memref<1x8xf32, #tpu.memory_space<vmem>>, %arg7: memref<1x8xf32, #tpu.memory_space<vmem>>) attributes {dimension_semantics = [#tpu.dimension_semantics<parallel>], iteration_bounds = array<i64: 1>, scalar_prefetch = 1 : i64, scratch_operands = 0 : i64, tpu.core_type = #tpu.core_type<tc>, window_params = [{transform_indices = @transform_0, window_bounds = array<i64: 1, 8>}, {transform_indices = @transform_1, window_bounds = array<i64: 1, 8>}, {transform_indices = @transform_2, window_bounds = array<i64: 1, 8>}, {transform_indices = @transform_3, window_bounds = array<i64: 1, 8>}, {transform_indices = @transform_4, window_bounds = array<i64: 1, 8>}, {transform_indices = @transform_5, window_bounds = array<i64: 1, 8>}]} {
    %c0 = arith.constant 0 : index
    %0 = memref.load %arg1[%c0] : memref<4xf32, #tpu.memory_space<smem>>
    %c1 = arith.constant 1 : index
    %1 = memref.load %arg1[%c1] : memref<4xf32, #tpu.memory_space<smem>>
    %c2 = arith.constant 2 : index
    %2 = memref.load %arg1[%c2] : memref<4xf32, #tpu.memory_space<smem>>
    %c3 = arith.constant 3 : index
    %3 = memref.load %arg1[%c3] : memref<4xf32, #tpu.memory_space<smem>>
    %4 = arith.mulf %1, %1 : f32
    %cst = arith.constant -5.000000e-01 : f32
    %5 = arith.mulf %cst, %4 : f32
    %6 = arith.mulf %3, %3 : f32
    %cst_0 = arith.constant -5.000000e-01 : f32
    %7 = arith.mulf %cst_0, %6 : f32
    %c0_1 = arith.constant 0 : index
    %c0_2 = arith.constant 0 : index
    %8 = vector.load %arg2[%c0_1, %c0_2] : memref<1x8xf32, #tpu.memory_space<vmem>>, vector<1x8xf32>
    %9 = vector.broadcast %0 : f32 to vector<1x8xf32>
    %10 = arith.subf %8, %9 : vector<1x8xf32>
    %c0_3 = arith.constant 0 : index
    %c0_4 = arith.constant 0 : index
    %11 = vector.load %arg3[%c0_3, %c0_4] : memref<1x8xf32, #tpu.memory_space<vmem>>, vector<1x8xf32>
    %12 = vector.broadcast %2 : f32 to vector<1x8xf32>
    %13 = arith.subf %11, %12 : vector<1x8xf32>
    %c0_5 = arith.constant 0 : index
    %c0_6 = arith.constant 0 : index
    %14 = vector.load %arg4[%c0_5, %c0_6] : memref<1x8xf32, #tpu.memory_space<vmem>>, vector<1x8xf32>
    %15 = arith.mulf %10, %10 : vector<1x8xf32>
    %16 = vector.broadcast %5 : f32 to vector<1x8xf32>
    %17 = arith.mulf %15, %16 : vector<1x8xf32>
    %18 = math.exp %17 : vector<1x8xf32>
    %19 = arith.mulf %14, %18 : vector<1x8xf32>
    %c0_7 = arith.constant 0 : index
    %c0_8 = arith.constant 0 : index
    %20 = vector.load %arg6[%c0_7, %c0_8] : memref<1x8xf32, #tpu.memory_space<vmem>>, vector<1x8xf32>
    tpu.vector_store %arg6[%c0_7, %c0_8], %19 {strides = array<i32>} : memref<1x8xf32, #tpu.memory_space<vmem>>, vector<1x8xf32>,
    %c0_9 = arith.constant 0 : index
    %c0_10 = arith.constant 0 : index
    %21 = vector.load %arg5[%c0_9, %c0_10] : memref<1x8xf32, #tpu.memory_space<vmem>>, vector<1x8xf32>
    %22 = arith.mulf %13, %13 : vector<1x8xf32>
    %23 = vector.broadcast %7 : f32 to vector<1x8xf32>
    %24 = arith.mulf %22, %23 : vector<1x8xf32>
    %25 = math.exp %24 : vector<1x8xf32>
    %26 = arith.mulf %21, %25 : vector<1x8xf32>
    %c0_11 = arith.constant 0 : index
    %c0_12 = arith.constant 0 : index
    %27 = vector.load %arg7[%c0_11, %c0_12] : memref<1x8xf32, #tpu.memory_space<vmem>>, vector<1x8xf32>
    tpu.vector_store %arg7[%c0_11, %c0_12], %26 {strides = array<i32>} : memref<1x8xf32, #tpu.memory_space<vmem>>, vector<1x8xf32>,
    return
  }
  func.func @transform_0(%arg0: i32, %arg1: memref<4xf32, #tpu.memory_space<smem>>) -> (i32, i32) {
    %c0_i32 = arith.constant 0 : i32
    %c0_i32_0 = arith.constant 0 : i32
    return %arg0, %c0_i32 : i32, i32
  }
  func.func @transform_1(%arg0: i32, %arg1: memref<4xf32, #tpu.memory_space<smem>>) -> (i32, i32) {
    %c0_i32 = arith.constant 0 : i32
    %c0_i32_0 = arith.constant 0 : i32
    return %arg0, %c0_i32 : i32, i32
  }
  func.func @transform_2(%arg0: i32, %arg1: memref<4xf32, #tpu.memory_space<smem>>) -> (i32, i32) {
    %c0_i32 = arith.constant 0 : i32
    %c0_i32_0 = arith.constant 0 : i32
    return %arg0, %c0_i32 : i32, i32
  }
  func.func @transform_3(%arg0: i32, %arg1: memref<4xf32, #tpu.memory_space<smem>>) -> (i32, i32) {
    %c0_i32 = arith.constant 0 : i32
    %c0_i32_0 = arith.constant 0 : i32
    return %arg0, %c0_i32 : i32, i32
  }
  func.func @transform_4(%arg0: i32, %arg1: memref<4xf32, #tpu.memory_space<smem>>) -> (i32, i32) {
    %c0_i32 = arith.constant 0 : i32
    %c0_i32_0 = arith.constant 0 : i32
    return %arg0, %c0_i32 : i32, i32
  }
  func.func @transform_5(%arg0: i32, %arg1: memref<4xf32, #tpu.memory_space<smem>>) -> (i32, i32) {
    %c0_i32 = arith.constant 0 : i32
    %c0_i32_0 = arith.constant 0 : i32
    return %arg0, %c0_i32 : i32, i32
  }
}

</mosaic_0001>

<llo_original>
// kernel: tpu_custom_call.1
$region0: #{tpu_custom_call.1}
  #allocation0 [shape = 'u32[]', space=smem, size = 0x4, offset = 0x4, fixed_abs, tag = 'smem constant byte address 0x4 - core index']
  #allocation1 [shape = 'u32[72,128]{1,0:T(1,128)}', space=vmem, size = 0x9000, scoped, tag = 'internal scratch']
  #allocation2 [shape = 's32[1]{0}', space=sflag, size = 0x4, scoped, tag = 'scoped memory for tpu_custom_call.1']
  #allocation3 [shape = 'u8[512]{0}', space=smem, size = 0x200, scoped, tag = 'prefetched SMEM operand 0']
  %s0 = inlined_call_operand.hbm [shape: f32[4], index: 0, kind: input, shape index: {}]
  %s1 = inlined_call_operand.hbm [shape: f32[1,8], index: 1, kind: input, shape index: {}]
  %s2 = inlined_call_operand.vmem [shape: f32[1,8], index: 2, kind: input, shape index: {}]
  %s3 = inlined_call_operand.vmem [shape: f32[1,8], index: 3, kind: input, shape index: {}]
  %s4 = inlined_call_operand.vmem [shape: f32[1,8], index: 4, kind: input, shape index: {}]
  %s5 = inlined_call_operand.hbm [shape: f32[1,8], index: 5, kind: output, shape index: {0}]
  %s6 = inlined_call_operand.hbm [shape: f32[1,8], index: 6, kind: output, shape index: {1}]
  %7 = xla_tuple %s5, %s6
  %s8 = sld [smem:[#allocation0]]
  $region38: #{tpu_custom_call.1} parent=0
    _
  %s10 = ssub.s32 1, %s8
  %s11 = scalar_select 0, %s10, %s8
  %s13 = sshll.u32 %s0, 4
  %s14 = int_to_ptr.hbm [resolvable:$true] %s13
  %16 = dma.hbm_to_smem %s14, 16, [#allocation3], [#allocation2]
  %18 = dma.done [#allocation2], 16
  %19 = sfence
  $region1: #{tpu_custom_call.1} parent=0
    #allocation4 [shape = 'u8[512]{0}', space=vmem, size = 0x400, scoped, tag = 'input window, operand 1, single buffered']
    #allocation5 [shape = 's32[1]{0}', space=sflag, size = 0x4, scoped, tag = 'scoped memory for tpu_custom_call.1']
    #allocation6 [shape = 's32[1]{0}', space=sflag, size = 0x4, scoped, tag = 'scoped memory for tpu_custom_call.1']
    #allocation7 [shape = 'u8[512]{0}', space=vmem, size = 0x400, scoped, tag = 'output window, operand 0, single buffered']
    #allocation8 [shape = 'u8[512]{0}', space=vmem, size = 0x400, scoped, tag = 'output window, operand 1, single buffered']
    #allocation9 [shape = 's32[1]{0}', space=sflag, size = 0x4, scoped, tag = 'scoped memory for tpu_custom_call.1']
    %20 = vsyncpa [#allocation5], 0
    %21 = vsyncpa [#allocation6], 0
    %22 = vsyncpa [#allocation9], 0
    // Predicated region
    $region2: #{tpu_custom_call.1} parent=1 // pred_check
      _
    $region3: #{tpu_custom_call.1} parent=1 // pred_check_branch
      %24 = sbr.rel (0) target = $region5
    $region4: #{tpu_custom_call.1} parent=1 // pred_region
      %26 = vsyncadd [#allocation5], 0
      %s28 = sshll.u32 %s1, 4
      %s29 = int_to_ptr.hbm [resolvable:$true] %s28
      %s30 = sshll.u32 [#allocation4], 4
      %s31 = int_to_ptr.vmem [resolvable:$true] %s30
      %33 = dma.hbm_to_vmem [thread:$0]  %s29, 16, %s31, [#allocation5]
    $region5: #{tpu_custom_call.1} parent=1 // pred_fallthru
      _
    // Predicated region
    $region6: #{tpu_custom_call.1} parent=1 // pred_check
      _
    $region7: #{tpu_custom_call.1} parent=1 // pred_check_branch
      %35 = sbr.rel (0) target = $region9
    $region8: #{tpu_custom_call.1} parent=1 // pred_region
      _
    $region9: #{tpu_custom_call.1} parent=1 // pred_fallthru
      _
    // Predicated region
    $region10: #{tpu_custom_call.1} parent=1 // pred_check
      _
    $region11: #{tpu_custom_call.1} parent=1 // pred_check_branch
      %37 = sbr.rel (0) target = $region13
    $region12: #{tpu_custom_call.1} parent=1 // pred_region
      _
    $region13: #{tpu_custom_call.1} parent=1 // pred_fallthru
      _
    // Predicated region
    $region14: #{tpu_custom_call.1} parent=1 // pred_check
      _
    $region15: #{tpu_custom_call.1} parent=1 // pred_check_branch
      %39 = sbr.rel (0) target = $region17
    $region16: #{tpu_custom_call.1} parent=1 // pred_region
      _
    $region17: #{tpu_custom_call.1} parent=1 // pred_fallthru
      _
    // Predicated region
    $region18: #{tpu_custom_call.1} parent=1 // pred_check
      _
    $region19: #{tpu_custom_call.1} parent=1 // pred_check_branch
      %41 = sbr.rel (0) target = $region21
    $region20: #{tpu_custom_call.1} parent=1 // pred_region
      %43 = dma.done [#allocation5], 16
    $region21: #{tpu_custom_call.1} parent=1 // pred_fallthru
      _
    %s44 = sld [smem:[#allocation3]]
    %s45 = sld [smem:[#allocation3 + $0x1]]
    %s46 = sld [smem:[#allocation3 + $0x2]]
    %s47 = sld [smem:[#allocation3 + $0x3]]
    %s48 = smul.f32 %s45, %s45
    %s49 = smul.f32 %s48, -0.5
    %s50 = smul.f32 %s47, %s47
    %s51 = smul.f32 %s50, -0.5
    %v52 = vld [vmem:[#allocation4] sm:$0x1]
    %v53 = vstv %s44
    %v54 = vsub.f32 %v52, %v53
    %v55 = vld [vmem:[%s2] sm:$0x1]
    %v56 = vstv %s46
    %v57 = vsub.f32 %v55, %v56
    %v58 = vld [vmem:[%s3] sm:$0x1]
    %v59 = vmul.f32 %v54, %v54
    %v60 = vstv %s49
    %v61 = vmul.f32 %v59, %v60
    %v62 = vmul.f32 %v61, 1.442695
    %v63 = vpow.pop %v62
    %v64 = vmul.f32 %v58, %v63
    %vm65 = vcmask 57344
    %66 = vst.msk [vmem:[#allocation7] sm:$0x1] %vm65, %v64
    %v67 = vld [vmem:[%s4] sm:$0x1]
    %v68 = vmul.f32 %v57, %v57
    %v69 = vstv %s51
    %v70 = vmul.f32 %v68, %v69
    %v71 = vmul.f32 %v70, 1.442695
    %v72 = vpow.pop %v71
    %v73 = vmul.f32 %v67, %v72
    %74 = vst.msk [vmem:[#allocation8] sm:$0x1] %vm65, %v73
    // Predicated region
    $region22: #{tpu_custom_call.1} parent=1 // pred_check
      _
    $region23: #{tpu_custom_call.1} parent=1 // pred_check_branch
      %76 = sbr.rel (0) target = $region25
    $region24: #{tpu_custom_call.1} parent=1 // pred_region
      %78 = vsyncadd [#allocation6], 0
      %s80 = sshll.u32 [#allocation7], 4
      %s81 = int_to_ptr.vmem [resolvable:$true] %s80
      %s82 = sshll.u32 %s5, 4
      %s83 = int_to_ptr.hbm [resolvable:$true] %s82
      %85 = dma.vmem_to_hbm [thread:$0]  %s81, 16, %s83, [#allocation6]
    $region25: #{tpu_custom_call.1} parent=1 // pred_fallthru
      _
    // Predicated region
    $region26: #{tpu_custom_call.1} parent=1 // pred_check
      _
    $region27: #{tpu_custom_call.1} parent=1 // pred_check_branch
      %87 = sbr.rel (0) target = $region29
    $region28: #{tpu_custom_call.1} parent=1 // pred_region
      %89 = vsyncadd [#allocation9], 0
      %s91 = sshll.u32 [#allocation8], 4
      %s92 = int_to_ptr.vmem [resolvable:$true] %s91
      %s93 = sshll.u32 %s6, 4
      %s94 = int_to_ptr.hbm [resolvable:$true] %s93
      %96 = dma.vmem_to_hbm [thread:$0]  %s92, 16, %s94, [#allocation9]
    $region29: #{tpu_custom_call.1} parent=1 // pred_fallthru
      _
    // Predicated region
    $region30: #{tpu_custom_call.1} parent=1 // pred_check
      _
    $region31: #{tpu_custom_call.1} parent=1 // pred_check_branch
      %98 = sbr.rel (0) target = $region33
    $region32: #{tpu_custom_call.1} parent=1 // pred_region
      %100 = dma.done [#allocation6], 16
    $region33: #{tpu_custom_call.1} parent=1 // pred_fallthru
      _
    // Predicated region
    $region34: #{tpu_custom_call.1} parent=1 // pred_check
      _
    $region35: #{tpu_custom_call.1} parent=1 // pred_check_branch
      %102 = sbr.rel (0) target = $region37
    $region36: #{tpu_custom_call.1} parent=1 // pred_region
      %104 = dma.done [#allocation9], 16
    $region37: #{tpu_custom_call.1} parent=1 // pred_fallthru
      _
    %105 = vsyncpa [#allocation5], 1
    %106 = vsyncpa [#allocation6], 1
    %107 = vsyncpa [#allocation9], 1

</llo_original>
